<compile_context>
chip_gen: v6e
topology: v6e:2x2x1
jax: 0.10.0
libtpu: 0.0.40
codegen_flags: <defaults>
</compile_context>

<pallas_src>
import jax
import jax.numpy as jnp
from jax.experimental import pallas as pl
from jax.experimental.pallas import tpu as pltpu


def mlp_kernel(x_ref, w1_ref, b1_ref, w2_ref, b2_ref, w3_ref, b3_ref,
               w4t_ref, b4_ref, o_ref):
    """One batch tile: x (TB, D_in) f32 -> cast bf16; weights bf16 resident; biases f32."""
    # In-kernel cast: avoids a separate wrapper-side HBM pass over x.
    x = x_ref[...].astype(jnp.bfloat16)

    h = jnp.dot(x, w1_ref[...], preferred_element_type=jnp.float32) + b1_ref[...]
    h = jnp.maximum(h, 0.0).astype(jnp.bfloat16)   # ReLU; Dropout(0.2) -> identity (eval)

    h = jnp.dot(h, w2_ref[...], preferred_element_type=jnp.float32) + b2_ref[...]
    h = jnp.maximum(h, 0.0).astype(jnp.bfloat16)   # ReLU; Dropout(0.2) -> identity (eval)

    h = jnp.dot(h, w3_ref[...], preferred_element_type=jnp.float32) + b3_ref[...]
    h = jnp.maximum(h, 0.0).astype(jnp.bfloat16)   # (TB, 32)

    # Final 32 -> 1 layer contracted against h's feature axis: result is a
    # lane-dense (1, TB) row instead of a (TB, 1) column -> unmasked vst.
    o = jax.lax.dot_general(
        w4t_ref[...], h,
        dimension_numbers=(((1,), (1,)), ((), ())),
        preferred_element_type=jnp.float32,
    ) + b4_ref[...]                                 # (1, TB) f32

    o_ref[...] = o.reshape(o_ref.shape).astype(o_ref.dtype)


def _auto_tb(batch):
    """Tile size: ~4 tiles (>=2 per TensorCore on v7x), clamped to [256, 2048],
    multiple of 256 (128 would suffice on v5e; 256 is safe on all generations)."""
    target = -(-batch // 4)                       # cdiv(batch, 4)
    tb = ((target + 255) // 256) * 256            # round up to multiple of 256
    return max(256, min(2048, tb))


def ride_prediction_forward(x, params, *, tb=None):
    """x: (B, D_in) float32.  params: (in, out) weights and (1, out) biases (f32)."""
    B, d_in = x.shape
    tb = _auto_tb(B) if tb is None else tb
    num_tiles = pl.cdiv(B, tb)

    # Weights are tiny (~50 KB total): cast once wrapper-side, keep VMEM-resident.
    w1 = params["w1"].astype(jnp.bfloat16)
    w2 = params["w2"].astype(jnp.bfloat16)
    w3 = params["w3"].astype(jnp.bfloat16)
    w4t = params["w4"].T.astype(jnp.bfloat16)       # (1, 32)
    b1, b2, b3, b4 = params["b1"], params["b2"], params["b3"], params["b4"]

    d1, d2, d3 = w1.shape[1], w2.shape[1], w3.shape[1]
    rows = num_tiles * tb
    flops = 2 * rows * (d_in * d1 + d1 * d2 + d2 * d3 + d3 * 1)
    bytes_accessed = (
        x.size * 4
        + (w1.size + w2.size + w3.size + w4t.size) * 2
        + (b1.size + b2.size + b3.size + b4.size) * 4
        + rows * 4
    )

    def full(a):
        return pl.BlockSpec(a.shape, lambda i: (0,) * a.ndim)

    out = pl.pallas_call(
        mlp_kernel,
        out_shape=jax.ShapeDtypeStruct((num_tiles, 1, tb), jnp.float32),
        grid=(num_tiles,),
        in_specs=[
            pl.BlockSpec((tb, d_in), lambda i: (i, 0)),   # x tile, pipelined (ragged tail OK)
            full(w1), full(b1),                           # weights/biases resident
            full(w2), full(b2),
            full(w3), full(b3),
            full(w4t), full(b4),
        ],
        out_specs=pl.BlockSpec((1, 1, tb), lambda i: (i, 0, 0)),  # lane-dense row
        compiler_params=pltpu.CompilerParams(
            dimension_semantics=("parallel",)),
        cost_estimate=pl.CostEstimate(
            flops=int(flops), transcendentals=0,
            bytes_accessed=int(bytes_accessed)),
    )(x, w1, b1, w2, b2, w3, b3, w4t, b4)

    # Row i*tb + j lives at out[i, 0, j]; flatten, drop the ragged tail.
    return out.reshape(-1)[:B].reshape(B, 1)


def init_params(key, input_size):
    """Deterministic init matching nn.Linear shapes (stored transposed: (in, out))."""
    dims = [(input_size, 128), (128, 64), (64, 32), (32, 1)]
    params = {}
    for i, (fan_in, fan_out) in enumerate(dims, start=1):
        key, kw, kb = jax.random.split(key, 3)
        bound = 1.0 / jnp.sqrt(fan_in)
        params[f"w{i}"] = jax.random.uniform(
            kw, (fan_in, fan_out), jnp.float32, minval=-bound, maxval=bound)
        params[f"b{i}"] = jax.random.uniform(
            kb, (1, fan_out), jnp.float32, minval=-bound, maxval=bound)
    return params


def reference_forward(x, p, compute_dtype=jnp.float32):
    cast = lambda a: a.astype(compute_dtype)
    h = jnp.maximum(jnp.dot(cast(x), cast(p["w1"]),
                            preferred_element_type=jnp.float32) + p["b1"], 0.0)
    h = jnp.maximum(jnp.dot(cast(h), cast(p["w2"]),
                            preferred_element_type=jnp.float32) + p["b2"], 0.0)
    h = jnp.maximum(jnp.dot(cast(h), cast(p["w3"]),
                            preferred_element_type=jnp.float32) + p["b3"], 0.0)
    return jnp.dot(cast(h), cast(p["w4"]),
                   preferred_element_type=jnp.float32) + p["b4"]


if __name__ == "__main__":
    key = jax.random.PRNGKey(0)
    k_x, k_p = jax.random.split(key)

    # 300 rows -> tb auto-selects 256 -> 2 tiles (one per TC on v7x) and a
    # ragged last tile handled in-kernel (no wrapper-side pad).
    batch, input_size = 300, 16
    x = jax.random.normal(k_x, (batch, input_size), dtype=jnp.float32)
    params = init_params(k_p, input_size)

    out = ride_prediction_forward(x, params)
    out = jax.block_until_ready(out)
    assert out.shape == (batch, 1), out.shape

    # Same-numerics reference (bf16 operands, f32 accumulation) -> tight check.
    ref_bf16 = reference_forward(x, params, compute_dtype=jnp.bfloat16)
    assert jnp.allclose(out, ref_bf16, atol=1e-3, rtol=1e-3), "mismatch vs bf16 reference"
    # Pure f32 reference -> loose check (bf16 rounding of operands).
    ref_f32 = reference_forward(x, params, compute_dtype=jnp.float32)
    assert jnp.allclose(out, ref_f32, atol=5e-2, rtol=5e-2), "mismatch vs f32 reference"

    print("KERNEL_OK")
</pallas_src>

<mosaic_0001>
module attributes {stable_mosaic.version = 11 : i64} {
  func.func @mlp_kernel(%arg0: i32, %arg1: memref<256x16xf32, #tpu.memory_space<vmem>>, %arg2: memref<16x128xbf16, #tpu.memory_space<vmem>>, %arg3: memref<1x128xf32, #tpu.memory_space<vmem>>, %arg4: memref<128x64xbf16, #tpu.memory_space<vmem>>, %arg5: memref<1x64xf32, #tpu.memory_space<vmem>>, %arg6: memref<64x32xbf16, #tpu.memory_space<vmem>>, %arg7: memref<1x32xf32, #tpu.memory_space<vmem>>, %arg8: memref<1x32xbf16, #tpu.memory_space<vmem>>, %arg9: memref<1x1xf32, #tpu.memory_space<vmem>>, %arg10: memref<1x1x256xf32, #tpu.memory_space<vmem>>) attributes {dimension_semantics = [#tpu.dimension_semantics<parallel>], iteration_bounds = array<i64: 2>, scalar_prefetch = 0 : i64, scratch_operands = 0 : i64, tpu.core_type = #tpu.core_type<tc>, window_params = [{transform_indices = @transform_0, window_bounds = array<i64: 256, 16>}, {pipeline_mode = #tpu.pipeline_mode<synchronous>, transform_indices = @transform_1, window_bounds = array<i64: 16, 128>}, {pipeline_mode = #tpu.pipeline_mode<synchronous>, transform_indices = @transform_2, window_bounds = array<i64: 1, 128>}, {pipeline_mode = #tpu.pipeline_mode<synchronous>, transform_indices = @transform_3, window_bounds = array<i64: 128, 64>}, {pipeline_mode = #tpu.pipeline_mode<synchronous>, transform_indices = @transform_4, window_bounds = array<i64: 1, 64>}, {pipeline_mode = #tpu.pipeline_mode<synchronous>, transform_indices = @transform_5, window_bounds = array<i64: 64, 32>}, {pipeline_mode = #tpu.pipeline_mode<synchronous>, transform_indices = @transform_6, window_bounds = array<i64: 1, 32>}, {pipeline_mode = #tpu.pipeline_mode<synchronous>, transform_indices = @transform_7, window_bounds = array<i64: 1, 32>}, {pipeline_mode = #tpu.pipeline_mode<synchronous>, transform_indices = @transform_8, window_bounds = array<i64: 1, 1>}, {transform_indices = @transform_9, window_bounds = array<i64: 1, 1, 256>}]} {
    %c0 = arith.constant 0 : index
    %c0_0 = arith.constant 0 : index
    %0 = vector.load %arg1[%c0, %c0_0] : memref<256x16xf32, #tpu.memory_space<vmem>>, vector<256x16xf32>
    %1 = arith.truncf %0 : vector<256x16xf32> to vector<256x16xbf16>
    %c0_1 = arith.constant 0 : index
    %c0_2 = arith.constant 0 : index
    %2 = vector.load %arg2[%c0_1, %c0_2] : memref<16x128xbf16, #tpu.memory_space<vmem>>, vector<16x128xbf16>
    %cst = arith.constant dense<0.000000e+00> : vector<256x128xf32>
    %3 = tpu.matmul %1, %2, %cst {dimension_numbers = #tpu.dot_dimension_numbers<[1], [0], [0], [1], [0, 0, 1, 1], [], []>} : vector<256x16xbf16>, vector<16x128xbf16>, vector<256x128xf32> -> vector<256x128xf32>
    %c0_3 = arith.constant 0 : index
    %c0_4 = arith.constant 0 : index
    %4 = vector.load %arg3[%c0_3, %c0_4] : memref<1x128xf32, #tpu.memory_space<vmem>>, vector<1x128xf32>
    %5 = vector.broadcast %4 : vector<1x128xf32> to vector<256x128xf32>
    %6 = arith.addf %3, %5 : vector<256x128xf32>
    %cst_5 = arith.constant 0.000000e+00 : f32
    %7 = vector.broadcast %cst_5 : f32 to vector<256x128xf32>
    %8 = arith.maximumf %6, %7 : vector<256x128xf32>
    %9 = arith.truncf %8 : vector<256x128xf32> to vector<256x128xbf16>
    %c0_6 = arith.constant 0 : index
    %c0_7 = arith.constant 0 : index
    %10 = vector.load %arg4[%c0_6, %c0_7] : memref<128x64xbf16, #tpu.memory_space<vmem>>, vector<128x64xbf16>
    %cst_8 = arith.constant dense<0.000000e+00> : vector<256x64xf32>
    %11 = tpu.matmul %9, %10, %cst_8 {dimension_numbers = #tpu.dot_dimension_numbers<[1], [0], [0], [1], [0, 0, 1, 1], [], []>} : vector<256x128xbf16>, vector<128x64xbf16>, vector<256x64xf32> -> vector<256x64xf32>
    %c0_9 = arith.constant 0 : index
    %c0_10 = arith.constant 0 : index
    %12 = vector.load %arg5[%c0_9, %c0_10] : memref<1x64xf32, #tpu.memory_space<vmem>>, vector<1x64xf32>
    %13 = vector.broadcast %12 : vector<1x64xf32> to vector<256x64xf32>
    %14 = arith.addf %11, %13 : vector<256x64xf32>
    %cst_11 = arith.constant 0.000000e+00 : f32
    %15 = vector.broadcast %cst_11 : f32 to vector<256x64xf32>
    %16 = arith.maximumf %14, %15 : vector<256x64xf32>
    %17 = arith.truncf %16 : vector<256x64xf32> to vector<256x64xbf16>
    %c0_12 = arith.constant 0 : index
    %c0_13 = arith.constant 0 : index
    %18 = vector.load %arg6[%c0_12, %c0_13] : memref<64x32xbf16, #tpu.memory_space<vmem>>, vector<64x32xbf16>
    %cst_14 = arith.constant dense<0.000000e+00> : vector<256x32xf32>
    %19 = tpu.matmul %17, %18, %cst_14 {dimension_numbers = #tpu.dot_dimension_numbers<[1], [0], [0], [1], [0, 0, 1, 1], [], []>} : vector<256x64xbf16>, vector<64x32xbf16>, vector<256x32xf32> -> vector<256x32xf32>
    %c0_15 = arith.constant 0 : index
    %c0_16 = arith.constant 0 : index
    %20 = vector.load %arg7[%c0_15, %c0_16] : memref<1x32xf32, #tpu.memory_space<vmem>>, vector<1x32xf32>
    %21 = vector.broadcast %20 : vector<1x32xf32> to vector<256x32xf32>
    %22 = arith.addf %19, %21 : vector<256x32xf32>
    %cst_17 = arith.constant 0.000000e+00 : f32
    %23 = vector.broadcast %cst_17 : f32 to vector<256x32xf32>
    %24 = arith.maximumf %22, %23 : vector<256x32xf32>
    %25 = arith.truncf %24 : vector<256x32xf32> to vector<256x32xbf16>
    %c0_18 = arith.constant 0 : index
    %c0_19 = arith.constant 0 : index
    %26 = vector.load %arg8[%c0_18, %c0_19] : memref<1x32xbf16, #tpu.memory_space<vmem>>, vector<1x32xbf16>
    %cst_20 = arith.constant dense<0.000000e+00> : vector<1x256xf32>
    %27 = tpu.matmul %26, %25, %cst_20 {dimension_numbers = #tpu.dot_dimension_numbers<[1], [1], [0], [0], [0, 0, 1, 0], [], []>} : vector<1x32xbf16>, vector<256x32xbf16>, vector<1x256xf32> -> vector<1x256xf32>
    %c0_21 = arith.constant 0 : index
    %c0_22 = arith.constant 0 : index
    %28 = vector.load %arg9[%c0_21, %c0_22] : memref<1x1xf32, #tpu.memory_space<vmem>>, vector<1x1xf32>
    %29 = vector.broadcast %28 : vector<1x1xf32> to vector<1x256xf32>
    %30 = arith.addf %27, %29 : vector<1x256xf32>
    %31 = vector.shape_cast %30 : vector<1x256xf32> to vector<1x1x256xf32>
    %c0_23 = arith.constant 0 : index
    %c0_24 = arith.constant 0 : index
    %c0_25 = arith.constant 0 : index
    %32 = vector.load %arg10[%c0_23, %c0_24, %c0_25] : memref<1x1x256xf32, #tpu.memory_space<vmem>>, vector<1x1x256xf32>
    tpu.vector_store %arg10[%c0_23, %c0_24, %c0_25], %31 {strides = array<i32>} : memref<1x1x256xf32, #tpu.memory_space<vmem>>, vector<1x1x256xf32>,
    return
  }
  func.func @transform_0(%arg0: i32) -> (i32, i32) {
    %c0_i32 = arith.constant 0 : i32
    %c0_i32_0 = arith.constant 0 : i32
    return %arg0, %c0_i32 : i32, i32
  }
  func.func @transform_1(%arg0: i32) -> (i32, i32) {
    %c0_i32 = arith.constant 0 : i32
    %c0_i32_0 = arith.constant 0 : i32
    %c0_i32_1 = arith.constant 0 : i32
    return %c0_i32, %c0_i32_0 : i32, i32
  }
  func.func @transform_2(%arg0: i32) -> (i32, i32) {
    %c0_i32 = arith.constant 0 : i32
    %c0_i32_0 = arith.constant 0 : i32
    %c0_i32_1 = arith.constant 0 : i32
    return %c0_i32, %c0_i32_0 : i32, i32
  }
  func.func @transform_3(%arg0: i32) -> (i32, i32) {
    %c0_i32 = arith.constant 0 : i32
    %c0_i32_0 = arith.constant 0 : i32
    %c0_i32_1 = arith.constant 0 : i32
    return %c0_i32, %c0_i32_0 : i32, i32
  }
  func.func @transform_4(%arg0: i32) -> (i32, i32) {
    %c0_i32 = arith.constant 0 : i32
    %c0_i32_0 = arith.constant 0 : i32
    %c0_i32_1 = arith.constant 0 : i32
    return %c0_i32, %c0_i32_0 : i32, i32
  }
  func.func @transform_5(%arg0: i32) -> (i32, i32) {
    %c0_i32 = arith.constant 0 : i32
    %c0_i32_0 = arith.constant 0 : i32
    %c0_i32_1 = arith.constant 0 : i32
    return %c0_i32, %c0_i32_0 : i32, i32
  }
  func.func @transform_6(%arg0: i32) -> (i32, i32) {
    %c0_i32 = arith.constant 0 : i32
    %c0_i32_0 = arith.constant 0 : i32
    %c0_i32_1 = arith.constant 0 : i32
    return %c0_i32, %c0_i32_0 : i32, i32
  }
  func.func @transform_7(%arg0: i32) -> (i32, i32) {
    %c0_i32 = arith.constant 0 : i32
    %c0_i32_0 = arith.constant 0 : i32
    %c0_i32_1 = arith.constant 0 : i32
    return %c0_i32, %c0_i32_0 : i32, i32
  }
  func.func @transform_8(%arg0: i32) -> (i32, i32) {
    %c0_i32 = arith.constant 0 : i32
    %c0_i32_0 = arith.constant 0 : i32
    %c0_i32_1 = arith.constant 0 : i32
    return %c0_i32, %c0_i32_0 : i32, i32
  }
  func.func @transform_9(%arg0: i32) -> (i32, i32, i32) {
    %c0_i32 = arith.constant 0 : i32
    %c0_i32_0 = arith.constant 0 : i32
    %c0_i32_1 = arith.constant 0 : i32
    return %arg0, %c0_i32, %c0_i32_0 : i32, i32, i32
  }
}

</mosaic_0001>

<llo_original>
// kernel: tpu_custom_call.1
$region0: #{tpu_custom_call.1}
  #allocation0 [shape = 'u32[]', space=smem, size = 0x4, offset = 0x4, fixed_abs, tag = 'smem constant byte address 0x4 - core index']
  #allocation1 [shape = 'u32[144,128]{1,0:T(1,128)}', space=vmem, size = 0x12000, scoped, tag = 'internal scratch']
  #allocation2 [shape = 'f32[1,1]{1,0:T(1,128)S(1)}', space=vmem, size = 0x200, scoped, tag = 'scoped memory for tpu_custom_call.1']
  %s0 = inlined_call_operand.vmem [shape: f32[300,16], index: 0, kind: input, shape index: {}]
  %s1 = inlined_call_operand.vmem [shape: bf16[16,128], index: 1, kind: input, shape index: {}]
  %s2 = inlined_call_operand.vmem [shape: f32[1,128], index: 2, kind: input, shape index: {}]
  %s3 = inlined_call_operand.vmem [shape: bf16[128,64], index: 3, kind: input, shape index: {}]
  %s4 = inlined_call_operand.vmem [shape: f32[1,64], index: 4, kind: input, shape index: {}]
  %s5 = inlined_call_operand.vmem [shape: bf16[64,32], index: 5, kind: input, shape index: {}]
  %s6 = inlined_call_operand.vmem [shape: f32[1,32], index: 6, kind: input, shape index: {}]
  %s7 = inlined_call_operand.vmem [shape: bf16[1,32], index: 7, kind: input, shape index: {}]
  %s8 = inlined_call_operand.<no memory space> [shape: f32[1,1], index: 8, kind: input, shape index: {}]
  %s9 = inlined_call_operand.hbm [shape: f32[2,1,256], index: 9, kind: output, shape index: {}]
  %s10 = sld [smem:[#allocation0]]
  $region69: #{tpu_custom_call.1} parent=0
    _
  %s12 = ssub.s32 1, %s10
  %s13 = scalar_select 0, %s12, %s10
  %v14 = vstv %s8
  %15 = vst [vmem:[#allocation2] sm:$0x1] %v14
  $region1: #{tpu_custom_call.1} parent=0
    #allocation3 [shape = 'u8[2048]{0}', space=vmem, size = 0x800, scoped, tag = 'output window, operand 0']
    #allocation4 [shape = 's32[2]{0}', space=sflag, size = 0x8, scoped, tag = 'scoped memory for tpu_custom_call.1']
    %16 = vsyncpa [#allocation4], 0
    %s17 = scalar_lea.sflag [#allocation4], 1
    %18 = vsyncpa %s17, 0
    loop: start=0, step=1, limit=4
    $region2: #{tpu_custom_call.1} parent=1 // loop_pre_header
      _
    $region3: #{tpu_custom_call.1} parent=1 // loop_header
      %s20 = sphi 0, %s24
      %p21 = scmp.ge.s32.totalorder %s20, 4
      %s30 = sphi 0, %s32
      %s33 = sphi 0, %s30
      %s34 = sphi 0, %s33
      %s50 = sphi 0, %s34
      %s54 = sphi 0, %s54
      %s56 = sphi 0, %s54
      %s57 = sphi 0, %s56
      %s71 = sphi 0, %s57
      %s75 = sphi 0, %s75
      %s77 = sphi 0, %s75
      %s78 = sphi 0, %s77
      %s92 = sphi 0, %s78
      %s96 = sphi 0, %s96
      %s98 = sphi 0, %s96
      %s99 = sphi 0, %s98
      %s113 = sphi 0, %s99
      %s117 = sphi 0, %s117
      %s119 = sphi 0, %s117
      %s120 = sphi 0, %s119
      %s134 = sphi 0, %s120
      %s138 = sphi 0, %s138
      %s140 = sphi 0, %s138
      %s141 = sphi 0, %s140
      %s155 = sphi 0, %s141
      %s159 = sphi 0, %s159
      %s161 = sphi 0, %s159
      %s162 = sphi 0, %s161
      %s176 = sphi 0, %s162
      %s180 = sphi 0, %s180
      %s182 = sphi 0, %s180
      %s183 = sphi 0, %s182
      %s197 = sphi 0, %s183
      %s201 = sphi 0, %s201
      %s203 = sphi 0, %s201
      %s204 = sphi 0, %s203
      %s218 = sphi 0, %s204
      %s224 = sphi 0, %s226
      %s227 = sphi 0, %s224
      %s228 = sphi 0, %s227
      %s244 = sphi 0, %s228
    $region4: #{tpu_custom_call.1} parent=1 // loop_header_branch
      %23 = sbr.rel (%p21) target = $region8
    $region5: #{tpu_custom_call.1} parent=1 // loop_body
      %s25 = ssub.s32 %s20, 1
      %s26 = ssub.s32 %s20, 2
      %s27 = sadd.s32 %s20, 1
      %s28 = ssub.s32 %s20, %s27
      %p29 = scmp.eq.s32.totalorder %s28, 0
      %s31 = sadd.s32 %s30, 1
      %s32 = scalar_select %p29, %s30, %s31
      %p35 = pneg %p29
      %p36 = scmp.eq.s32.totalorder %s20, 1
      %p37 = por %p35, %p36
      %p38 = scmp.ne.s32.totalorder %s30, %s33
      %p39 = scmp.eq.s32.totalorder %s20, 0
      %p40 = por %p38, %p39
      %p41 = scmp.ne.s32.totalorder %s30, %s33
      %p42 = scmp.eq.s32.totalorder %s25, 1
      %p43 = por %p41, %p42
      %p44 = scmp.ne.s32.totalorder %s33, %s34
      %p45 = scmp.eq.s32.totalorder %s25, 0
      %p46 = por %p44, %p45
      %p47 = scmp.ne.s32.totalorder %s33, %s34
      %p48 = scmp.eq.s32.totalorder %s26, 1
      %p49 = por %p47, %p48
      %p51 = scmp.ne.s32.totalorder %s34, %s50
      %p52 = scmp.eq.s32.totalorder %s26, 0
      %p53 = por %p51, %p52
      %s55 = sadd.s32 %s54, 1
      %p58 = scmp.eq.s32.totalorder %s20, 1
      %p59 = scmp.ne.s32.totalorder %s54, %s56
      %p60 = scmp.eq.s32.totalorder %s20, 0
      %p61 = por %p59, %p60
      %p62 = scmp.ne.s32.totalorder %s54, %s56
      %p63 = scmp.eq.s32.totalorder %s25, 1
      %p64 = por %p62, %p63
      %p65 = scmp.ne.s32.totalorder %s56, %s57
      %p66 = scmp.eq.s32.totalorder %s25, 0
      %p67 = por %p65, %p66
      %p68 = scmp.ne.s32.totalorder %s56, %s57
      %p69 = scmp.eq.s32.totalorder %s26, 1
      %p70 = por %p68, %p69
      %p72 = scmp.ne.s32.totalorder %s57, %s71
      %p73 = scmp.eq.s32.totalorder %s26, 0
      %p74 = por %p72, %p73
      %s76 = sadd.s32 %s75, 1
      %p79 = scmp.eq.s32.totalorder %s20, 1
      %p80 = scmp.ne.s32.totalorder %s75, %s77
      %p81 = scmp.eq.s32.totalorder %s20, 0
      %p82 = por %p80, %p81
      %p83 = scmp.ne.s32.totalorder %s75, %s77
      %p84 = scmp.eq.s32.totalorder %s25, 1
      %p85 = por %p83, %p84
      %p86 = scmp.ne.s32.totalorder %s77, %s78
      %p87 = scmp.eq.s32.totalorder %s25, 0
      %p88 = por %p86, %p87
      %p89 = scmp.ne.s32.totalorder %s77, %s78
      %p90 = scmp.eq.s32.totalorder %s26, 1
      %p91 = por %p89, %p90
      %p93 = scmp.ne.s32.totalorder %s78, %s92
      %p94 = scmp.eq.s32.totalorder %s26, 0
      %p95 = por %p93, %p94
      %s97 = sadd.s32 %s96, 1
      %p100 = scmp.eq.s32.totalorder %s20, 1
      %p101 = scmp.ne.s32.totalorder %s96, %s98
      %p102 = scmp.eq.s32.totalorder %s20, 0
      %p103 = por %p101, %p102
      %p104 = scmp.ne.s32.totalorder %s96, %s98
      %p105 = scmp.eq.s32.totalorder %s25, 1
      %p106 = por %p104, %p105
      %p107 = scmp.ne.s32.totalorder %s98, %s99
      %p108 = scmp.eq.s32.totalorder %s25, 0
      %p109 = por %p107, %p108
      %p110 = scmp.ne.s32.totalorder %s98, %s99
      %p111 = scmp.eq.s32.totalorder %s26, 1
      %p112 = por %p110, %p111
      %p114 = scmp.ne.s32.totalorder %s99, %s113
      %p115 = scmp.eq.s32.totalorder %s26, 0
      %p116 = por %p114, %p115
      %s118 = sadd.s32 %s117, 1
      %p121 = scmp.eq.s32.totalorder %s20, 1
      %p122 = scmp.ne.s32.totalorder %s117, %s119
      %p123 = scmp.eq.s32.totalorder %s20, 0
      %p124 = por %p122, %p123
      %p125 = scmp.ne.s32.totalorder %s117, %s119
      %p126 = scmp.eq.s32.totalorder %s25, 1
      %p127 = por %p125, %p126
      %p128 = scmp.ne.s32.totalorder %s119, %s120
      %p129 = scmp.eq.s32.totalorder %s25, 0
      %p130 = por %p128, %p129
      %p131 = scmp.ne.s32.totalorder %s119, %s120
      %p132 = scmp.eq.s32.totalorder %s26, 1
      %p133 = por %p131, %p132
      %p135 = scmp.ne.s32.totalorder %s120, %s134
      %p136 = scmp.eq.s32.totalorder %s26, 0
      %p137 = por %p135, %p136
      %s139 = sadd.s32 %s138, 1
      %p142 = scmp.eq.s32.totalorder %s20, 1
      %p143 = scmp.ne.s32.totalorder %s138, %s140
      %p144 = scmp.eq.s32.totalorder %s20, 0
      %p145 = por %p143, %p144
      %p146 = scmp.ne.s32.totalorder %s138, %s140
      %p147 = scmp.eq.s32.totalorder %s25, 1
      %p148 = por %p146, %p147
      %p149 = scmp.ne.s32.totalorder %s140, %s141
      %p150 = scmp.eq.s32.totalorder %s25, 0
      %p151 = por %p149, %p150
      %p152 = scmp.ne.s32.totalorder %s140, %s141
      %p153 = scmp.eq.s32.totalorder %s26, 1
      %p154 = por %p152, %p153
      %p156 = scmp.ne.s32.totalorder %s141, %s155
      %p157 = scmp.eq.s32.totalorder %s26, 0
      %p158 = por %p156, %p157
      %s160 = sadd.s32 %s159, 1
      %p163 = scmp.eq.s32.totalorder %s20, 1
      %p164 = scmp.ne.s32.totalorder %s159, %s161
      %p165 = scmp.eq.s32.totalorder %s20, 0
      %p166 = por %p164, %p165
      %p167 = scmp.ne.s32.totalorder %s159, %s161
      %p168 = scmp.eq.s32.totalorder %s25, 1
      %p169 = por %p167, %p168
      %p170 = scmp.ne.s32.totalorder %s161, %s162
      %p171 = scmp.eq.s32.totalorder %s25, 0
      %p172 = por %p170, %p171
      %p173 = scmp.ne.s32.totalorder %s161, %s162
      %p174 = scmp.eq.s32.totalorder %s26, 1
      %p175 = por %p173, %p174
      %p177 = scmp.ne.s32.totalorder %s162, %s176
      %p178 = scmp.eq.s32.totalorder %s26, 0
      %p179 = por %p177, %p178
      %s181 = sadd.s32 %s180, 1
      %p184 = scmp.eq.s32.totalorder %s20, 1
      %p185 = scmp.ne.s32.totalorder %s180, %s182
      %p186 = scmp.eq.s32.totalorder %s20, 0
      %p187 = por %p185, %p186
      %p188 = scmp.ne.s32.totalorder %s180, %s182
      %p189 = scmp.eq.s32.totalorder %s25, 1
      %p190 = por %p188, %p189
      %p191 = scmp.ne.s32.totalorder %s182, %s183
      %p192 = scmp.eq.s32.totalorder %s25, 0
      %p193 = por %p191, %p192
      %p194 = scmp.ne.s32.totalorder %s182, %s183
      %p195 = scmp.eq.s32.totalorder %s26, 1
      %p196 = por %p194, %p195
      %p198 = scmp.ne.s32.totalorder %s183, %s197
      %p199 = scmp.eq.s32.totalorder %s26, 0
      %p200 = por %p198, %p199
      %s202 = sadd.s32 %s201, 1
      %p205 = scmp.eq.s32.totalorder %s20, 1
      %p206 = scmp.ne.s32.totalorder %s201, %s203
      %p207 = scmp.eq.s32.totalorder %s20, 0
      %p208 = por %p206, %p207
      %p209 = scmp.ne.s32.totalorder %s201, %s203
      %p210 = scmp.eq.s32.totalorder %s25, 1
      %p211 = por %p209, %p210
      %p212 = scmp.ne.s32.totalorder %s203, %s204
      %p213 = scmp.eq.s32.totalorder %s25, 0
      %p214 = por %p212, %p213
      %p215 = scmp.ne.s32.totalorder %s203, %s204
      %p216 = scmp.eq.s32.totalorder %s26, 1
      %p217 = por %p215, %p216
      %p219 = scmp.ne.s32.totalorder %s204, %s218
      %p220 = scmp.eq.s32.totalorder %s26, 0
      %p221 = por %p219, %p220
      %s222 = ssub.s32 %s20, %s27
      %p223 = scmp.eq.s32.totalorder %s222, 0
      %s225 = sadd.s32 %s224, 1
      %s226 = scalar_select %p223, %s224, %s225
      %p229 = pneg %p223
      %p230 = scmp.eq.s32.totalorder %s20, 1
      %p231 = por %p229, %p230
      %p232 = scmp.ne.s32.totalorder %s224, %s227
      %p233 = scmp.eq.s32.totalorder %s20, 0
      %p234 = por %p232, %p233
      %p235 = scmp.ne.s32.totalorder %s224, %s227
      %p236 = scmp.eq.s32.totalorder %s25, 1
      %p237 = por %p235, %p236
      %p238 = scmp.ne.s32.totalorder %s227, %s228
      %p239 = scmp.eq.s32.totalorder %s25, 0
      %p240 = por %p238, %p239
      %p241 = scmp.ne.s32.totalorder %s227, %s228
      %p242 = scmp.eq.s32.totalorder %s26, 1
      %p243 = por %p241, %p242
      %p245 = scmp.ne.s32.totalorder %s228, %s244
      %p246 = scmp.eq.s32.totalorder %s26, 0
      %p247 = por %p245, %p246
      %p248 = scmp.le.s32.totalorder 1, %s20
      %p249 = scmp.lt.s32.totalorder %s20, 3
      %p250 = pnand %p248, %p249
      %p251 = pneg %p250
      // Predicated region
      $region9: #{tpu_custom_call.1} parent=5 // pred_check
        _
      $region10: #{tpu_custom_call.1} parent=5 // pred_check_branch
        %253 = sbr.rel (%p250) target = $region12
      $region11: #{tpu_custom_call.1} parent=5 // pred_region
        %s254 = ssub.s32 %s20, 1
        // Predicated region
        $region13: #{tpu_custom_call.1} parent=11 // pred_check
          %p255 = pneg %p67
        $region14: #{tpu_custom_call.1} parent=11 // pred_check_branch
          %257 = sbr.rel (%p255) target = $region16
        $region15: #{tpu_custom_call.1} parent=11 // pred_region
          _
        $region16: #{tpu_custom_call.1} parent=11 // pred_fallthru
          _
        // Predicated region
        $region17: #{tpu_custom_call.1} parent=11 // pred_check
          %p258 = pneg %p88
        $region18: #{tpu_custom_call.1} parent=11 // pred_check_branch
          %260 = sbr.rel (%p258) target = $region20
        $region19: #{tpu_custom_call.1} parent=11 // pred_region
          _
        $region20: #{tpu_custom_call.1} parent=11 // pred_fallthru
          _
        // Predicated region
        $region21: #{tpu_custom_call.1} parent=11 // pred_check
          %p261 = pneg %p109
        $region22: #{tpu_custom_call.1} parent=11 // pred_check_branch
          %263 = sbr.rel (%p261) target = $region24
        $region23: #{tpu_custom_call.1} parent=11 // pred_region
          _
        $region24: #{tpu_custom_call.1} parent=11 // pred_fallthru
          _
        // Predicated region
        $region25: #{tpu_custom_call.1} parent=11 // pred_check
          %p264 = pneg %p130
        $region26: #{tpu_custom_call.1} parent=11 // pred_check_branch
          %266 = sbr.rel (%p264) target = $region28
        $region27: #{tpu_custom_call.1} parent=11 // pred_region
          _
        $region28: #{tpu_custom_call.1} parent=11 // pred_fallthru
          _
        // Predicated region
        $region29: #{tpu_custom_call.1} parent=11 // pred_check
          %p267 = pneg %p151
        $region30: #{tpu_custom_call.1} parent=11 // pred_check_branch
          %269 = sbr.rel (%p267) target = $region32
        $region31: #{tpu_custom_call.1} parent=11 // pred_region
          _
        $region32: #{tpu_custom_call.1} parent=11 // pred_fallthru
          _
        // Predicated region
        $region33: #{tpu_custom_call.1} parent=11 // pred_check
          %p270 = pneg %p172
        $region34: #{tpu_custom_call.1} parent=11 // pred_check_branch
          %272 = sbr.rel (%p270) target = $region36
        $region35: #{tpu_custom_call.1} parent=11 // pred_region
          _
        $region36: #{tpu_custom_call.1} parent=11 // pred_fallthru
          _
        // Predicated region
        $region37: #{tpu_custom_call.1} parent=11 // pred_check
          %p273 = pneg %p193
        $region38: #{tpu_custom_call.1} parent=11 // pred_check_branch
          %275 = sbr.rel (%p273) target = $region40
        $region39: #{tpu_custom_call.1} parent=11 // pred_region
          _
        $region40: #{tpu_custom_call.1} parent=11 // pred_fallthru
          _
        // Predicated region
        $region41: #{tpu_custom_call.1} parent=11 // pred_check
          %p276 = pneg %p214
        $region42: #{tpu_custom_call.1} parent=11 // pred_check_branch
          %278 = sbr.rel (%p276) target = $region44
        $region43: #{tpu_custom_call.1} parent=11 // pred_region
          _
        $region44: #{tpu_custom_call.1} parent=11 // pred_fallthru
          _
      $region12: #{tpu_custom_call.1} parent=5 // pred_fallthru
        _
      %p279 = scmp.lt.s32.totalorder %s20, 2
      // Predicated region
      $region45: #{tpu_custom_call.1} parent=5 // pred_check
        %p280 = pneg %p279
      $region46: #{tpu_custom_call.1} parent=5 // pred_check_branch
        %282 = sbr.rel (%p280) target = $region48
      $region47: #{tpu_custom_call.1} parent=5 // pred_region
        // Predicated region
        $region49: #{tpu_custom_call.1} parent=47 // pred_check
          %p283 = pneg %p40
        $region50: #{tpu_custom_call.1} parent=47 // pred_check_branch
          %285 = sbr.rel (%p283) target = $region52
        $region51: #{tpu_custom_call.1} parent=47 // pred_region
          %s286 = smul.u32 32, %s20
          %s287 = ssub.s32 38, %s286
          %p288 = scmp.lt.s32.totalorder %s287, 32
          %s289 = scalar_select %p288, %s287, 32
          %s290 = smul.u32 128, %s289
          %p291 = scmp.lt.s32.totalorder %s286, 37
          %s292 = scalar_select %p291, %s286, 37
          %s293 = smul.addr %s292, 8
          %s294 = scalar_lea.vmem %s0, %s293
          %s295 = smul.u32 32, %s20
          %s296 = ssub.s32 38, %s295
          %p297 = scmp.lt.s32.totalorder %s296, 32
          %s298 = scalar_select %p297, %s296, 32
          %s299 = smul.u32 128, %s298
        $region52: #{tpu_custom_call.1} parent=47 // pred_fallthru
          _
      $region48: #{tpu_custom_call.1} parent=5 // pred_fallthru
        _
      %p300 = scmp.le.s32.totalorder 1, %s20
      %p301 = scmp.lt.s32.totalorder %s20, 3
      %p302 = pnand %p300, %p301
      %p303 = pneg %p302
      // Predicated region
      $region53: #{tpu_custom_call.1} parent=5 // pred_check
        _
      $region54: #{tpu_custom_call.1} parent=5 // pred_check_branch
        %305 = sbr.rel (%p302) target = $region56
      $region55: #{tpu_custom_call.1} parent=5 // pred_region
        %s306 = ssub.s32 %s20, 1
        %s307 = smul.u32 32, %s25
        %s308 = ssub.s32 38, %s307
        %p309 = scmp.lt.s32.totalorder %s308, 32
        %s310 = scalar_select %p309, %s308, 32
        %s311 = smul.u32 128, %s310
        %p312 = scmp.lt.s32.totalorder %s307, 37
        %s313 = scalar_select %p312, %s307, 37
        %s314 = smul.addr %s313, 8
        %s315 = scalar_lea.vmem %s0, %s314
        %p316 = pneg %p46
        %p317 = pneg %p43
        %p318 = pneg %p67
        %p319 = pneg %p64
        %p320 = pneg %p88
        %p321 = pneg %p85
        %p322 = pneg %p109
        %p323 = pneg %p106
        %p324 = pneg %p130
        %p325 = pneg %p127
        %p326 = pneg %p151
        %p327 = pneg %p148
        %p328 = pneg %p172
        %p329 = pneg %p169
        %p330 = pneg %p193
        %p331 = pneg %p190
        %p332 = pneg %p214
        %p333 = pneg %p211
        %p334 = pneg %p240
        %p335 = pneg %p237
        %s336 = sand.u32 %s227, 1
        %s337 = scalar_lea.sflag [#allocation4], %s336
        %s338 = sand.u32 %s227, 1
        %s339 = smul.addr %s338, 2
        %s340 = scalar_lea.vmem [#allocation3], %s339
        %s341 = smul.u32 32, %s25
        %s342 = ssub.s32 38, %s341
        %p343 = scmp.lt.s32.totalorder %s342, 32
        %s344 = scalar_select %p343, %s342, 32
        %s345 = smul.u32 128, %s344
        %p346 = scmp.lt.s32.totalorder %s341, 37
        %s347 = scalar_select %p346, %s341, 37
        %s348 = smul.addr %s347, 8
        %s349 = scalar_lea.vmem %s0, %s348
        %s350 = smul.u32 32, %s25
        %s351 = ssub.s32 38, %s350
        %p352 = scmp.lt.s32.totalorder %s351, 32
        %s353 = scalar_select %p352, %s351, 32
        %s354 = smul.u32 128, %s353
        %v356 = vld [vmem:[%s349] sm:$0xff]
        %v357 = vld [vmem:[%s349 + $0x8] sm:$0xff]
        %v358 = vld [vmem:[%s349 + $0x10] sm:$0xff]
        %v359 = vld [vmem:[%s349 + $0x18] sm:$0xff]
        %v360 = vld [vmem:[%s349 + $0x20] sm:$0xff]
        %v361 = vld [vmem:[%s349 + $0x28] sm:$0xff]
        %v362 = vld [vmem:[%s349 + $0x30] sm:$0xff]
        %v363 = vld [vmem:[%s349 + $0x38] sm:$0xff]
        %v364 = vld [vmem:[%s349 + $0x40] sm:$0xff]
        %v365 = vld [vmem:[%s349 + $0x48] sm:$0xff]
        %v366 = vld [vmem:[%s349 + $0x50] sm:$0xff]
        %v367 = vld [vmem:[%s349 + $0x58] sm:$0xff]
        %v368 = vld [vmem:[%s349 + $0x60] sm:$0xff]
        %v369 = vld [vmem:[%s349 + $0x68] sm:$0xff]
        %v370 = vld [vmem:[%s349 + $0x70] sm:$0xff]
        %v371 = vld [vmem:[%s349 + $0x78] sm:$0xff]
        %v372 = vld [vmem:[%s349 + $0x80] sm:$0xff]
        %v373 = vld [vmem:[%s349 + $0x88] sm:$0xff]
        %v374 = vld [vmem:[%s349 + $0x90] sm:$0xff]
        %v375 = vld [vmem:[%s349 + $0x98] sm:$0xff]
        %v376 = vld [vmem:[%s349 + $0xa0] sm:$0xff]
        %v377 = vld [vmem:[%s349 + $0xa8] sm:$0xff]
        %v378 = vld [vmem:[%s349 + $0xb0] sm:$0xff]
        %v379 = vld [vmem:[%s349 + $0xb8] sm:$0xff]
        %v380 = vld [vmem:[%s349 + $0xc0] sm:$0xff]
        %v381 = vld [vmem:[%s349 + $0xc8] sm:$0xff]
        %v382 = vld [vmem:[%s349 + $0xd0] sm:$0xff]
        %v383 = vld [vmem:[%s349 + $0xd8] sm:$0xff]
        %v384 = vld [vmem:[%s349 + $0xe0] sm:$0xff]
        %v385 = vld [vmem:[%s349 + $0xe8] sm:$0xff]
        %v386 = vld [vmem:[%s349 + $0xf0] sm:$0xff]
        %v387 = vld [vmem:[%s349 + $0xf8] sm:$0xff]
        %v388 = vpack.c.bf16 %v357, %v356
        %v389 = vpack.c.bf16 %v359, %v358
        %v390 = vpack.c.bf16 %v361, %v360
        %v391 = vpack.c.bf16 %v363, %v362
        %v392 = vpack.c.bf16 %v365, %v364
        %v393 = vpack.c.bf16 %v367, %v366
        %v394 = vpack.c.bf16 %v369, %v368
        %v395 = vpack.c.bf16 %v371, %v370
        %v396 = vpack.c.bf16 %v373, %v372
        %v397 = vpack.c.bf16 %v375, %v374
        %v398 = vpack.c.bf16 %v377, %v376
        %v399 = vpack.c.bf16 %v379, %v378
        %v400 = vpack.c.bf16 %v381, %v380
        %v401 = vpack.c.bf16 %v383, %v382
        %v402 = vpack.c.bf16 %v385, %v384
        %v403 = vpack.c.bf16 %v387, %v386
        %v404 = vld [vmem:[%s1] sm:$0xf]
        %v405 = vld [vmem:[%s1 + $0x4] sm:$0xf]
        %v406 = vld [vmem:[%s2] sm:$0x1]
        %v408 = vlaneseq
        %v409 = vshrl.u32 %v408, 7
        %v410 = vsub.s32 0, %v409
        %v411 = vrot.slane %v406, %v410
        %v415 = vunpack.c.l.b16 %v404
        %v416 = vunpack.c.l.b16 %v405
        %v417 = vpack.c.b16 %v416, %v415
        %vm419 = vcmask 130048
        %v421 = vsel %vm419, %v388, 0
        %v424 = vsel %vm419, %v389, 0
        %v427 = vsel %vm419, %v390, 0
        %v430 = vsel %vm419, %v391, 0
        %v433 = vsel %vm419, %v392, 0
        %v436 = vsel %vm419, %v393, 0
        %v439 = vsel %vm419, %v394, 0
        %v442 = vsel %vm419, %v395, 0
        %v445 = vsel %vm419, %v396, 0
        %v448 = vsel %vm419, %v397, 0
        %v451 = vsel %vm419, %v398, 0
        %v454 = vsel %vm419, %v399, 0
        %v457 = vsel %vm419, %v400, 0
        %v460 = vsel %vm419, %v401, 0
        %v463 = vsel %vm419, %v402, 0
        %v466 = vsel %vm419, %v403, 0
        %468 = vmatprep.subr.bf16.mxu0 0
        %469 = vmatpush1.bf16.msra.mxu0 0
        %470 = vmatprep.subr.bf16.mxu0 0
        %471 = vmatpush1.bf16.msra.mxu0 0
        %472 = vmatprep.subr.bf16.mxu0 0
        %473 = vmatpush1.bf16.msra.mxu0 0
        %474 = vmatprep.subr.bf16.mxu0 0
        %475 = vmatpush1.bf16.msra.mxu0 0
        %476 = vmatprep.subr.bf16.mxu0 0
        %477 = vmatpush1.bf16.msra.mxu0 0
        %478 = vmatprep.subr.bf16.mxu0 0
        %479 = vmatpush1.bf16.msra.mxu0 0
        %480 = vmatprep.subr.bf16.mxu0 0
        %481 = vmatpush1.bf16.msra.mxu0 0
        %482 = vmatprep.subr.bf16.mxu0 0
        %483 = vmatpush1.bf16.msra.mxu0 %v417
        %484 = vmatprep.subr.bf16.mxu0 0
        %485 = vmatpush2.bf16.msra.mxu0 0
        %486 = vmatprep.subr.bf16.mxu0 0
        %487 = vmatpush2.bf16.msra.mxu0 0
        %488 = vmatprep.subr.bf16.mxu0 0
        %489 = vmatpush2.bf16.msra.mxu0 0
        %490 = vmatprep.subr.bf16.mxu0 0
        %491 = vmatpush2.bf16.msra.mxu0 0
        %492 = vmatprep.subr.bf16.mxu0 0
        %493 = vmatpush2.bf16.msra.mxu0 0
        %494 = vmatprep.subr.bf16.mxu0 0
        %495 = vmatpush2.bf16.msra.mxu0 0
        %496 = vmatprep.subr.bf16.mxu0 0
        %497 = vmatpush2.bf16.msra.mxu0 0
        %498 = vmatprep.subr.bf16.mxu0 0
        %499 = vmatpush2.bf16.msra.mxu0 0
        %500 = vmatprep.mubr.bf16.mxu0 0
        %501 = vmatmul.mubr.bf16.gmra.mxu0 %v421
        %v502 = vpop.f32.mrf.mxu0
        %v503 = vadd.f32 %v411, %v502
        %v504 = vpop.f32.mrf.mxu0
        %v505 = vpop.f32.mrf.mxu0
        %v506 = vadd.f32 %v411, %v505
        %v507 = vpop.f32.mrf.mxu0
        %508 = vmatprep.mubr.bf16.mxu0 0
        %509 = vmatmul.mubr.bf16.gmra.mxu0 %v424
        %v510 = vpop.f32.mrf.mxu0
        %v511 = vadd.f32 %v411, %v510
        %v512 = vpop.f32.mrf.mxu0
        %v513 = vpop.f32.mrf.mxu0
        %v514 = vadd.f32 %v411, %v513
        %v515 = vpop.f32.mrf.mxu0
        %516 = vmatprep.mubr.bf16.mxu0 0
        %517 = vmatmul.mubr.bf16.gmra.mxu0 %v427
        %v518 = vpop.f32.mrf.mxu0
        %v519 = vadd.f32 %v411, %v518
        %v520 = vpop.f32.mrf.mxu0
        %v521 = vpop.f32.mrf.mxu0
        %v522 = vadd.f32 %v411, %v521
        %v523 = vpop.f32.mrf.mxu0
        %524 = vmatprep.mubr.bf16.mxu0 0
        %525 = vmatmul.mubr.bf16.gmra.mxu0 %v430
        %v526 = vpop.f32.mrf.mxu0
        %v527 = vadd.f32 %v411, %v526
        %v528 = vpop.f32.mrf.mxu0
        %v529 = vpop.f32.mrf.mxu0
        %v530 = vadd.f32 %v411, %v529
        %v531 = vpop.f32.mrf.mxu0
        %532 = vmatprep.mubr.bf16.mxu0 0
        %533 = vmatmul.mubr.bf16.gmra.mxu0 %v433
        %v534 = vpop.f32.mrf.mxu0
        %v535 = vadd.f32 %v411, %v534
        %v536 = vpop.f32.mrf.mxu0
        %v537 = vpop.f32.mrf.mxu0
        %v538 = vadd.f32 %v411, %v537
        %v539 = vpop.f32.mrf.mxu0
        %540 = vmatprep.mubr.bf16.mxu0 0
        %541 = vmatmul.mubr.bf16.gmra.mxu0 %v436
        %v542 = vpop.f32.mrf.mxu0
        %v543 = vadd.f32 %v411, %v542
        %v544 = vpop.f32.mrf.mxu0
        %v545 = vpop.f32.mrf.mxu0
        %v546 = vadd.f32 %v411, %v545
        %v547 = vpop.f32.mrf.mxu0
        %548 = vmatprep.mubr.bf16.mxu0 0
        %549 = vmatmul.mubr.bf16.gmra.mxu0 %v439
        %v550 = vpop.f32.mrf.mxu0
        %v551 = vadd.f32 %v411, %v550
        %v552 = vpop.f32.mrf.mxu0
        %v553 = vpop.f32.mrf.mxu0
        %v554 = vadd.f32 %v411, %v553
        %v555 = vpop.f32.mrf.mxu0
        %556 = vmatprep.mubr.bf16.mxu0 0
        %557 = vmatmul.mubr.bf16.gmra.mxu0 %v442
        %v558 = vpop.f32.mrf.mxu0
        %v559 = vadd.f32 %v411, %v558
        %v560 = vpop.f32.mrf.mxu0
        %v561 = vpop.f32.mrf.mxu0
        %v562 = vadd.f32 %v411, %v561
        %v563 = vpop.f32.mrf.mxu0
        %564 = vmatprep.mubr.bf16.mxu0 0
        %565 = vmatmul.mubr.bf16.gmra.mxu0 %v445
        %v566 = vpop.f32.mrf.mxu0
        %v567 = vadd.f32 %v411, %v566
        %v568 = vpop.f32.mrf.mxu0
        %v569 = vpop.f32.mrf.mxu0
        %v570 = vadd.f32 %v411, %v569
        %v571 = vpop.f32.mrf.mxu0
        %572 = vmatprep.mubr.bf16.mxu0 0
        %573 = vmatmul.mubr.bf16.gmra.mxu0 %v448
        %v574 = vpop.f32.mrf.mxu0
        %v575 = vadd.f32 %v411, %v574
        %v576 = vpop.f32.mrf.mxu0
        %v577 = vpop.f32.mrf.mxu0
        %v578 = vadd.f32 %v411, %v577
        %v579 = vpop.f32.mrf.mxu0
        %580 = vmatprep.mubr.bf16.mxu0 0
        %581 = vmatmul.mubr.bf16.gmra.mxu0 %v451
        %v582 = vpop.f32.mrf.mxu0
        %v583 = vadd.f32 %v411, %v582
        %v584 = vpop.f32.mrf.mxu0
        %v585 = vpop.f32.mrf.mxu0
        %v586 = vadd.f32 %v411, %v585
        %v587 = vpop.f32.mrf.mxu0
        %588 = vmatprep.mubr.bf16.mxu0 0
        %589 = vmatmul.mubr.bf16.gmra.mxu0 %v454
        %v590 = vpop.f32.mrf.mxu0
        %v591 = vadd.f32 %v411, %v590
        %v592 = vpop.f32.mrf.mxu0
        %v593 = vpop.f32.mrf.mxu0
        %v594 = vadd.f32 %v411, %v593
        %v595 = vpop.f32.mrf.mxu0
        %596 = vmatprep.mubr.bf16.mxu0 0
        %597 = vmatmul.mubr.bf16.gmra.mxu0 %v457
        %v598 = vpop.f32.mrf.mxu0
        %v599 = vadd.f32 %v411, %v598
        %v600 = vpop.f32.mrf.mxu0
        %v601 = vpop.f32.mrf.mxu0
        %v602 = vadd.f32 %v411, %v601
        %v603 = vpop.f32.mrf.mxu0
        %604 = vmatprep.mubr.bf16.mxu0 0
        %605 = vmatmul.mubr.bf16.gmra.mxu0 %v460
        %v606 = vpop.f32.mrf.mxu0
        %v607 = vadd.f32 %v411, %v606
        %v608 = vpop.f32.mrf.mxu0
        %v609 = vpop.f32.mrf.mxu0
        %v610 = vadd.f32 %v411, %v609
        %v611 = vpop.f32.mrf.mxu0
        %612 = vmatprep.mubr.bf16.mxu0 0
        %613 = vmatmul.mubr.bf16.gmra.mxu0 %v463
        %v614 = vpop.f32.mrf.mxu0
        %v615 = vadd.f32 %v411, %v614
        %v616 = vpop.f32.mrf.mxu0
        %v617 = vpop.f32.mrf.mxu0
        %v618 = vadd.f32 %v411, %v617
        %v619 = vpop.f32.mrf.mxu0
        %620 = vmatprep.mubr.bf16.mxu0 0
        %621 = vmatmul.mubr.bf16.gmra.mxu0 %v466
        %v622 = vpop.f32.mrf.mxu0
        %v623 = vadd.f32 %v411, %v622
        %v624 = vpop.f32.mrf.mxu0
        %v625 = vpop.f32.mrf.mxu0
        %v626 = vadd.f32 %v411, %v625
        %v627 = vpop.f32.mrf.mxu0
        %628 = vdwg.mxu0
        %v629 = vmax.f32 %v503, 0.0
        %v630 = vmax.f32 %v506, 0.0
        %v631 = vmax.f32 %v511, 0.0
        %v632 = vmax.f32 %v514, 0.0
        %v633 = vmax.f32 %v519, 0.0
        %v634 = vmax.f32 %v522, 0.0
        %v635 = vmax.f32 %v527, 0.0
        %v636 = vmax.f32 %v530, 0.0
        %v637 = vmax.f32 %v535, 0.0
        %v638 = vmax.f32 %v538, 0.0
        %v639 = vmax.f32 %v543, 0.0
        %v640 = vmax.f32 %v546, 0.0
        %v641 = vmax.f32 %v551, 0.0
        %v642 = vmax.f32 %v554, 0.0
        %v643 = vmax.f32 %v559, 0.0
        %v644 = vmax.f32 %v562, 0.0
        %v645 = vmax.f32 %v567, 0.0
        %v646 = vmax.f32 %v570, 0.0
        %v647 = vmax.f32 %v575, 0.0
        %v648 = vmax.f32 %v578, 0.0
        %v649 = vmax.f32 %v583, 0.0
        %v650 = vmax.f32 %v586, 0.0
        %v651 = vmax.f32 %v591, 0.0
        %v652 = vmax.f32 %v594, 0.0
        %v653 = vmax.f32 %v599, 0.0
        %v654 = vmax.f32 %v602, 0.0
        %v655 = vmax.f32 %v607, 0.0
        %v656 = vmax.f32 %v610, 0.0
        %v657 = vmax.f32 %v615, 0.0
        %v658 = vmax.f32 %v618, 0.0
        %v659 = vmax.f32 %v623, 0.0
        %v660 = vmax.f32 %v626, 0.0
        %v661 = vpack.c.bf16 %v630, %v629
        %v662 = vpack.c.bf16 %v632, %v631
        %v663 = vpack.c.bf16 %v634, %v633
        %v664 = vpack.c.bf16 %v636, %v635
        %v665 = vpack.c.bf16 %v638, %v637
        %v666 = vpack.c.bf16 %v640, %v639
        %v667 = vpack.c.bf16 %v642, %v641
        %v668 = vpack.c.bf16 %v644, %v643
        %v669 = vpack.c.bf16 %v646, %v645
        %v670 = vpack.c.bf16 %v648, %v647
        %v671 = vpack.c.bf16 %v650, %v649
        %v672 = vpack.c.bf16 %v652, %v651
        %v673 = vpack.c.bf16 %v654, %v653
        %v674 = vpack.c.bf16 %v656, %v655
        %v675 = vpack.c.bf16 %v658, %v657
        %v676 = vpack.c.bf16 %v660, %v659
        %v677 = vld [vmem:[%s3] sm:$0xf]
        %v678 = vld [vmem:[%s3 + $0x4] sm:$0xf]
        %v679 = vld [vmem:[%s3 + $0x8] sm:$0xf]
        %v680 = vld [vmem:[%s3 + $0xc] sm:$0xf]
        %v681 = vld [vmem:[%s3 + $0x10] sm:$0xf]
        %v682 = vld [vmem:[%s3 + $0x14] sm:$0xf]
        %v683 = vld [vmem:[%s3 + $0x18] sm:$0xf]
        %v684 = vld [vmem:[%s3 + $0x1c] sm:$0xf]
        %v685 = vld [vmem:[%s3 + $0x20] sm:$0xf]
        %v686 = vld [vmem:[%s3 + $0x24] sm:$0xf]
        %v687 = vld [vmem:[%s3 + $0x28] sm:$0xf]
        %v688 = vld [vmem:[%s3 + $0x2c] sm:$0xf]
        %v689 = vld [vmem:[%s3 + $0x30] sm:$0xf]
        %v690 = vld [vmem:[%s3 + $0x34] sm:$0xf]
        %v691 = vld [vmem:[%s3 + $0x38] sm:$0xf]
        %v692 = vld [vmem:[%s3 + $0x3c] sm:$0xf]
        %v693 = vld [vmem:[%s4] sm:$0x1]
        %v695 = vlaneseq
        %v696 = vshrl.u32 %v695, 7
        %v697 = vsub.s32 0, %v696
        %v698 = vrot.slane %v693, %v697
        %v716 = vunpack.c.l.b16 %v677
        %v717 = vunpack.c.l.b16 %v678
        %v718 = vunpack.c.l.b16 %v679
        %v719 = vunpack.c.l.b16 %v680
        %v720 = vunpack.c.l.b16 %v681
        %v721 = vunpack.c.l.b16 %v682
        %v722 = vunpack.c.l.b16 %v683
        %v723 = vunpack.c.l.b16 %v684
        %v724 = vunpack.c.l.b16 %v685
        %v725 = vunpack.c.l.b16 %v686
        %v726 = vunpack.c.l.b16 %v687
        %v727 = vunpack.c.l.b16 %v688
        %v728 = vunpack.c.l.b16 %v689
        %v729 = vunpack.c.l.b16 %v690
        %v730 = vunpack.c.l.b16 %v691
        %v731 = vunpack.c.l.b16 %v692
        %v732 = vpack.c.b16 %v717, %v716
        %v733 = vpack.c.b16 %v719, %v718
        %v734 = vpack.c.b16 %v721, %v720
        %v735 = vpack.c.b16 %v723, %v722
        %v736 = vpack.c.b16 %v725, %v724
        %v737 = vpack.c.b16 %v727, %v726
        %v738 = vpack.c.b16 %v729, %v728
        %v739 = vpack.c.b16 %v731, %v730
        %748 = vmatprep.subr.bf16.mxu0 0
        %749 = vmatpush1.bf16.msra.mxu0 %v739
        %750 = vmatprep.subr.bf16.mxu0 0
        %751 = vmatpush1.bf16.msra.mxu0 %v738
        %752 = vmatprep.subr.bf16.mxu0 0
        %753 = vmatpush1.bf16.msra.mxu0 %v737
        %754 = vmatprep.subr.bf16.mxu0 0
        %755 = vmatpush1.bf16.msra.mxu0 %v736
        %756 = vmatprep.subr.bf16.mxu0 0
        %757 = vmatpush1.bf16.msra.mxu0 %v735
        %758 = vmatprep.subr.bf16.mxu0 0
        %759 = vmatpush1.bf16.msra.mxu0 %v734
        %760 = vmatprep.subr.bf16.mxu0 0
        %761 = vmatpush1.bf16.msra.mxu0 %v733
        %762 = vmatprep.subr.bf16.mxu0 0
        %763 = vmatpush1.bf16.msra.mxu0 %v732
        %764 = vmatprep.subr.bf16.mxu0 0
        %765 = vmatpush2.bf16.msra.mxu0 0
        %766 = vmatprep.subr.bf16.mxu0 0
        %767 = vmatpush2.bf16.msra.mxu0 0
        %768 = vmatprep.subr.bf16.mxu0 0
        %769 = vmatpush2.bf16.msra.mxu0 0
        %770 = vmatprep.subr.bf16.mxu0 0
        %771 = vmatpush2.bf16.msra.mxu0 0
        %772 = vmatprep.subr.bf16.mxu0 0
        %773 = vmatpush2.bf16.msra.mxu0 0
        %774 = vmatprep.subr.bf16.mxu0 0
        %775 = vmatpush2.bf16.msra.mxu0 0
        %776 = vmatprep.subr.bf16.mxu0 0
        %777 = vmatpush2.bf16.msra.mxu0 0
        %778 = vmatprep.subr.bf16.mxu0 0
        %779 = vmatpush2.bf16.msra.mxu0 0
        %780 = vmatprep.mubr.bf16.mxu0 0
        %781 = vmatmul.mubr.bf16.gmra.mxu0 %v661
        %v782 = vpop.f32.mrf.mxu0
        %v783 = vadd.f32 %v698, %v782
        %v784 = vpop.f32.mrf.mxu0
        %v785 = vpop.f32.mrf.mxu0
        %v786 = vadd.f32 %v698, %v785
        %v787 = vpop.f32.mrf.mxu0
        %788 = vmatprep.mubr.bf16.mxu0 0
        %789 = vmatmul.mubr.bf16.gmra.mxu0 %v662
        %v790 = vpop.f32.mrf.mxu0
        %v791 = vadd.f32 %v698, %v790
        %v792 = vpop.f32.mrf.mxu0
        %v793 = vpop.f32.mrf.mxu0
        %v794 = vadd.f32 %v698, %v793
        %v795 = vpop.f32.mrf.mxu0
        %796 = vmatprep.mubr.bf16.mxu0 0
        %797 = vmatmul.mubr.bf16.gmra.mxu0 %v663
        %v798 = vpop.f32.mrf.mxu0
        %v799 = vadd.f32 %v698, %v798
        %v800 = vpop.f32.mrf.mxu0
        %v801 = vpop.f32.mrf.mxu0
        %v802 = vadd.f32 %v698, %v801
        %v803 = vpop.f32.mrf.mxu0
        %804 = vmatprep.mubr.bf16.mxu0 0
        %805 = vmatmul.mubr.bf16.gmra.mxu0 %v664
        %v806 = vpop.f32.mrf.mxu0
        %v807 = vadd.f32 %v698, %v806
        %v808 = vpop.f32.mrf.mxu0
        %v809 = vpop.f32.mrf.mxu0
        %v810 = vadd.f32 %v698, %v809
        %v811 = vpop.f32.mrf.mxu0
        %812 = vmatprep.mubr.bf16.mxu0 0
        %813 = vmatmul.mubr.bf16.gmra.mxu0 %v665
        %v814 = vpop.f32.mrf.mxu0
        %v815 = vadd.f32 %v698, %v814
        %v816 = vpop.f32.mrf.mxu0
        %v817 = vpop.f32.mrf.mxu0
        %v818 = vadd.f32 %v698, %v817
        %v819 = vpop.f32.mrf.mxu0
        %820 = vmatprep.mubr.bf16.mxu0 0
        %821 = vmatmul.mubr.bf16.gmra.mxu0 %v666
        %v822 = vpop.f32.mrf.mxu0
        %v823 = vadd.f32 %v698, %v822
        %v824 = vpop.f32.mrf.mxu0
        %v825 = vpop.f32.mrf.mxu0
        %v826 = vadd.f32 %v698, %v825
        %v827 = vpop.f32.mrf.mxu0
        %828 = vmatprep.mubr.bf16.mxu0 0
        %829 = vmatmul.mubr.bf16.gmra.mxu0 %v667
        %v830 = vpop.f32.mrf.mxu0
        %v831 = vadd.f32 %v698, %v830
        %v832 = vpop.f32.mrf.mxu0
        %v833 = vpop.f32.mrf.mxu0
        %v834 = vadd.f32 %v698, %v833
        %v835 = vpop.f32.mrf.mxu0
        %836 = vmatprep.mubr.bf16.mxu0 0
        %837 = vmatmul.mubr.bf16.gmra.mxu0 %v668
        %v838 = vpop.f32.mrf.mxu0
        %v839 = vadd.f32 %v698, %v838
        %v840 = vpop.f32.mrf.mxu0
        %v841 = vpop.f32.mrf.mxu0
        %v842 = vadd.f32 %v698, %v841
        %v843 = vpop.f32.mrf.mxu0
        %844 = vmatprep.mubr.bf16.mxu0 0
        %845 = vmatmul.mubr.bf16.gmra.mxu0 %v669
        %v846 = vpop.f32.mrf.mxu0
        %v847 = vadd.f32 %v698, %v846
        %v848 = vpop.f32.mrf.mxu0
        %v849 = vpop.f32.mrf.mxu0
        %v850 = vadd.f32 %v698, %v849
        %v851 = vpop.f32.mrf.mxu0
        %852 = vmatprep.mubr.bf16.mxu0 0
        %853 = vmatmul.mubr.bf16.gmra.mxu0 %v670
        %v854 = vpop.f32.mrf.mxu0
        %v855 = vadd.f32 %v698, %v854
        %v856 = vpop.f32.mrf.mxu0
        %v857 = vpop.f32.mrf.mxu0
        %v858 = vadd.f32 %v698, %v857
        %v859 = vpop.f32.mrf.mxu0
        %860 = vmatprep.mubr.bf16.mxu0 0
        %861 = vmatmul.mubr.bf16.gmra.mxu0 %v671
        %v862 = vpop.f32.mrf.mxu0
        %v863 = vadd.f32 %v698, %v862
        %v864 = vpop.f32.mrf.mxu0
        %v865 = vpop.f32.mrf.mxu0
        %v866 = vadd.f32 %v698, %v865
        %v867 = vpop.f32.mrf.mxu0
        %868 = vmatprep.mubr.bf16.mxu0 0
        %869 = vmatmul.mubr.bf16.gmra.mxu0 %v672
        %v870 = vpop.f32.mrf.mxu0
        %v871 = vadd.f32 %v698, %v870
        %v872 = vpop.f32.mrf.mxu0
        %v873 = vpop.f32.mrf.mxu0
        %v874 = vadd.f32 %v698, %v873
        %v875 = vpop.f32.mrf.mxu0
        %876 = vmatprep.mubr.bf16.mxu0 0
        %877 = vmatmul.mubr.bf16.gmra.mxu0 %v673
        %v878 = vpop.f32.mrf.mxu0
        %v879 = vadd.f32 %v698, %v878
        %v880 = vpop.f32.mrf.mxu0
        %v881 = vpop.f32.mrf.mxu0
        %v882 = vadd.f32 %v698, %v881
        %v883 = vpop.f32.mrf.mxu0
        %884 = vmatprep.mubr.bf16.mxu0 0
        %885 = vmatmul.mubr.bf16.gmra.mxu0 %v674
        %v886 = vpop.f32.mrf.mxu0
        %v887 = vadd.f32 %v698, %v886
        %v888 = vpop.f32.mrf.mxu0
        %v889 = vpop.f32.mrf.mxu0
        %v890 = vadd.f32 %v698, %v889
        %v891 = vpop.f32.mrf.mxu0
        %892 = vmatprep.mubr.bf16.mxu0 0
        %893 = vmatmul.mubr.bf16.gmra.mxu0 %v675
        %v894 = vpop.f32.mrf.mxu0
        %v895 = vadd.f32 %v698, %v894
        %v896 = vpop.f32.mrf.mxu0
        %v897 = vpop.f32.mrf.mxu0
        %v898 = vadd.f32 %v698, %v897
        %v899 = vpop.f32.mrf.mxu0
        %900 = vmatprep.mubr.bf16.mxu0 0
        %901 = vmatmul.mubr.bf16.gmra.mxu0 %v676
        %v902 = vpop.f32.mrf.mxu0
        %v903 = vadd.f32 %v698, %v902
        %v904 = vpop.f32.mrf.mxu0
        %v905 = vpop.f32.mrf.mxu0
        %v906 = vadd.f32 %v698, %v905
        %v907 = vpop.f32.mrf.mxu0
        %908 = vdwg.mxu0
        %v909 = vmax.f32 %v783, 0.0
        %v910 = vmax.f32 %v786, 0.0
        %v911 = vmax.f32 %v791, 0.0
        %v912 = vmax.f32 %v794, 0.0
        %v913 = vmax.f32 %v799, 0.0
        %v914 = vmax.f32 %v802, 0.0
        %v915 = vmax.f32 %v807, 0.0
        %v916 = vmax.f32 %v810, 0.0
        %v917 = vmax.f32 %v815, 0.0
        %v918 = vmax.f32 %v818, 0.0
        %v919 = vmax.f32 %v823, 0.0
        %v920 = vmax.f32 %v826, 0.0
        %v921 = vmax.f32 %v831, 0.0
        %v922 = vmax.f32 %v834, 0.0
        %v923 = vmax.f32 %v839, 0.0
        %v924 = vmax.f32 %v842, 0.0
        %v925 = vmax.f32 %v847, 0.0
        %v926 = vmax.f32 %v850, 0.0
        %v927 = vmax.f32 %v855, 0.0
        %v928 = vmax.f32 %v858, 0.0
        %v929 = vmax.f32 %v863, 0.0
        %v930 = vmax.f32 %v866, 0.0
        %v931 = vmax.f32 %v871, 0.0
        %v932 = vmax.f32 %v874, 0.0
        %v933 = vmax.f32 %v879, 0.0
        %v934 = vmax.f32 %v882, 0.0
        %v935 = vmax.f32 %v887, 0.0
        %v936 = vmax.f32 %v890, 0.0
        %v937 = vmax.f32 %v895, 0.0
        %v938 = vmax.f32 %v898, 0.0
        %v939 = vmax.f32 %v903, 0.0
        %v940 = vmax.f32 %v906, 0.0
        %v941 = vpack.c.bf16 %v910, %v909
        %v942 = vpack.c.bf16 %v912, %v911
        %v943 = vpack.c.bf16 %v914, %v913
        %v944 = vpack.c.bf16 %v916, %v915
        %v945 = vpack.c.bf16 %v918, %v917
        %v946 = vpack.c.bf16 %v920, %v919
        %v947 = vpack.c.bf16 %v922, %v921
        %v948 = vpack.c.bf16 %v924, %v923
        %v949 = vpack.c.bf16 %v926, %v925
        %v950 = vpack.c.bf16 %v928, %v927
        %v951 = vpack.c.bf16 %v930, %v929
        %v952 = vpack.c.bf16 %v932, %v931
        %v953 = vpack.c.bf16 %v934, %v933
        %v954 = vpack.c.bf16 %v936, %v935
        %v955 = vpack.c.bf16 %v938, %v937
        %v956 = vpack.c.bf16 %v940, %v939
        %v957 = vld [vmem:[%s5] sm:$0xf]
        %v958 = vld [vmem:[%s5 + $0x4] sm:$0xf]
        %v959 = vld [vmem:[%s5 + $0x8] sm:$0xf]
        %v960 = vld [vmem:[%s5 + $0xc] sm:$0xf]
        %v961 = vld [vmem:[%s5 + $0x10] sm:$0xf]
        %v962 = vld [vmem:[%s5 + $0x14] sm:$0xf]
        %v963 = vld [vmem:[%s5 + $0x18] sm:$0xf]
        %v964 = vld [vmem:[%s5 + $0x1c] sm:$0xf]
        %v965 = vld [vmem:[%s6] sm:$0x1]
        %v967 = vlaneseq
        %v968 = vshrl.u32 %v967, 7
        %v969 = vsub.s32 0, %v968
        %v970 = vrot.slane %v965, %v969
        %v980 = vunpack.c.l.b16 %v957
        %v981 = vunpack.c.l.b16 %v958
        %v982 = vunpack.c.l.b16 %v959
        %v983 = vunpack.c.l.b16 %v960
        %v984 = vunpack.c.l.b16 %v961
        %v985 = vunpack.c.l.b16 %v962
        %v986 = vunpack.c.l.b16 %v963
        %v987 = vunpack.c.l.b16 %v964
        %v988 = vpack.c.b16 %v981, %v980
        %v989 = vpack.c.b16 %v983, %v982
        %v990 = vpack.c.b16 %v985, %v984
        %v991 = vpack.c.b16 %v987, %v986
        %vm996 = vcmask 523264
        %v998 = vsel %vm996, %v941, 0
        %v1001 = vsel %vm996, %v942, 0
        %v1004 = vsel %vm996, %v943, 0
        %v1007 = vsel %vm996, %v944, 0
        %v1010 = vsel %vm996, %v945, 0
        %v1013 = vsel %vm996, %v946, 0
        %v1016 = vsel %vm996, %v947, 0
        %v1019 = vsel %vm996, %v948, 0
        %v1022 = vsel %vm996, %v949, 0
        %v1025 = vsel %vm996, %v950, 0
        %v1028 = vsel %vm996, %v951, 0
        %v1031 = vsel %vm996, %v952, 0
        %v1034 = vsel %vm996, %v953, 0
        %v1037 = vsel %vm996, %v954, 0
        %v1040 = vsel %vm996, %v955, 0
        %v1043 = vsel %vm996, %v956, 0
        %1045 = vmatprep.subr.bf16.mxu0 0
        %1046 = vmatpush1.bf16.msra.mxu0 0
        %1047 = vmatprep.subr.bf16.mxu0 0
        %1048 = vmatpush1.bf16.msra.mxu0 0
        %1049 = vmatprep.subr.bf16.mxu0 0
        %1050 = vmatpush1.bf16.msra.mxu0 0
        %1051 = vmatprep.subr.bf16.mxu0 0
        %1052 = vmatpush1.bf16.msra.mxu0 0
        %1053 = vmatprep.subr.bf16.mxu0 0
        %1054 = vmatpush1.bf16.msra.mxu0 %v991
        %1055 = vmatprep.subr.bf16.mxu0 0
        %1056 = vmatpush1.bf16.msra.mxu0 %v990
        %1057 = vmatprep.subr.bf16.mxu0 0
        %1058 = vmatpush1.bf16.msra.mxu0 %v989
        %1059 = vmatprep.subr.bf16.mxu0 0
        %1060 = vmatpush1.bf16.msra.mxu0 %v988
        %1061 = vmatprep.subr.bf16.mxu0 0
        %1062 = vmatpush2.bf16.msra.mxu0 0
        %1063 = vmatprep.subr.bf16.mxu0 0
        %1064 = vmatpush2.bf16.msra.mxu0 0
        %1065 = vmatprep.subr.bf16.mxu0 0
        %1066 = vmatpush2.bf16.msra.mxu0 0
        %1067 = vmatprep.subr.bf16.mxu0 0
        %1068 = vmatpush2.bf16.msra.mxu0 0
        %1069 = vmatprep.subr.bf16.mxu0 0
        %1070 = vmatpush2.bf16.msra.mxu0 0
        %1071 = vmatprep.subr.bf16.mxu0 0
        %1072 = vmatpush2.bf16.msra.mxu0 0
        %1073 = vmatprep.subr.bf16.mxu0 0
        %1074 = vmatpush2.bf16.msra.mxu0 0
        %1075 = vmatprep.subr.bf16.mxu0 0
        %1076 = vmatpush2.bf16.msra.mxu0 0
        %1077 = vmatprep.mubr.bf16.mxu0 0
        %1078 = vmatmul.mubr.bf16.gmra.mxu0 %v998
        %v1079 = vpop.f32.mrf.mxu0
        %v1080 = vadd.f32 %v970, %v1079
        %v1081 = vpop.f32.mrf.mxu0
        %v1082 = vpop.f32.mrf.mxu0
        %v1083 = vadd.f32 %v970, %v1082
        %v1084 = vpop.f32.mrf.mxu0
        %1085 = vmatprep.mubr.bf16.mxu0 0
        %1086 = vmatmul.mubr.bf16.gmra.mxu0 %v1001
        %v1087 = vpop.f32.mrf.mxu0
        %v1088 = vadd.f32 %v970, %v1087
        %v1089 = vpop.f32.mrf.mxu0
        %v1090 = vpop.f32.mrf.mxu0
        %v1091 = vadd.f32 %v970, %v1090
        %v1092 = vpop.f32.mrf.mxu0
        %1093 = vmatprep.mubr.bf16.mxu0 0
        %1094 = vmatmul.mubr.bf16.gmra.mxu0 %v1004
        %v1095 = vpop.f32.mrf.mxu0
        %v1096 = vadd.f32 %v970, %v1095
        %v1097 = vpop.f32.mrf.mxu0
        %v1098 = vpop.f32.mrf.mxu0
        %v1099 = vadd.f32 %v970, %v1098
        %v1100 = vpop.f32.mrf.mxu0
        %1101 = vmatprep.mubr.bf16.mxu0 0
        %1102 = vmatmul.mubr.bf16.gmra.mxu0 %v1007
        %v1103 = vpop.f32.mrf.mxu0
        %v1104 = vadd.f32 %v970, %v1103
        %v1105 = vpop.f32.mrf.mxu0
        %v1106 = vpop.f32.mrf.mxu0
        %v1107 = vadd.f32 %v970, %v1106
        %v1108 = vpop.f32.mrf.mxu0
        %1109 = vmatprep.mubr.bf16.mxu0 0
        %1110 = vmatmul.mubr.bf16.gmra.mxu0 %v1010
        %v1111 = vpop.f32.mrf.mxu0
        %v1112 = vadd.f32 %v970, %v1111
        %v1113 = vpop.f32.mrf.mxu0
        %v1114 = vpop.f32.mrf.mxu0
        %v1115 = vadd.f32 %v970, %v1114
        %v1116 = vpop.f32.mrf.mxu0
        %1117 = vmatprep.mubr.bf16.mxu0 0
        %1118 = vmatmul.mubr.bf16.gmra.mxu0 %v1013
        %v1119 = vpop.f32.mrf.mxu0
        %v1120 = vadd.f32 %v970, %v1119
        %v1121 = vpop.f32.mrf.mxu0
        %v1122 = vpop.f32.mrf.mxu0
        %v1123 = vadd.f32 %v970, %v1122
        %v1124 = vpop.f32.mrf.mxu0
        %1125 = vmatprep.mubr.bf16.mxu0 0
        %1126 = vmatmul.mubr.bf16.gmra.mxu0 %v1016
        %v1127 = vpop.f32.mrf.mxu0
        %v1128 = vadd.f32 %v970, %v1127
        %v1129 = vpop.f32.mrf.mxu0
        %v1130 = vpop.f32.mrf.mxu0
        %v1131 = vadd.f32 %v970, %v1130
        %v1132 = vpop.f32.mrf.mxu0
        %1133 = vmatprep.mubr.bf16.mxu0 0
        %1134 = vmatmul.mubr.bf16.gmra.mxu0 %v1019
        %v1135 = vpop.f32.mrf.mxu0
        %v1136 = vadd.f32 %v970, %v1135
        %v1137 = vpop.f32.mrf.mxu0
        %v1138 = vpop.f32.mrf.mxu0
        %v1139 = vadd.f32 %v970, %v1138
        %v1140 = vpop.f32.mrf.mxu0
        %1141 = vmatprep.mubr.bf16.mxu0 0
        %1142 = vmatmul.mubr.bf16.gmra.mxu0 %v1022
        %v1143 = vpop.f32.mrf.mxu0
        %v1144 = vadd.f32 %v970, %v1143
        %v1145 = vpop.f32.mrf.mxu0
        %v1146 = vpop.f32.mrf.mxu0
        %v1147 = vadd.f32 %v970, %v1146
        %v1148 = vpop.f32.mrf.mxu0
        %1149 = vmatprep.mubr.bf16.mxu0 0
        %1150 = vmatmul.mubr.bf16.gmra.mxu0 %v1025
        %v1151 = vpop.f32.mrf.mxu0
        %v1152 = vadd.f32 %v970, %v1151
        %v1153 = vpop.f32.mrf.mxu0
        %v1154 = vpop.f32.mrf.mxu0
        %v1155 = vadd.f32 %v970, %v1154
        %v1156 = vpop.f32.mrf.mxu0
        %1157 = vmatprep.mubr.bf16.mxu0 0
        %1158 = vmatmul.mubr.bf16.gmra.mxu0 %v1028
        %v1159 = vpop.f32.mrf.mxu0
        %v1160 = vadd.f32 %v970, %v1159
        %v1161 = vpop.f32.mrf.mxu0
        %v1162 = vpop.f32.mrf.mxu0
        %v1163 = vadd.f32 %v970, %v1162
        %v1164 = vpop.f32.mrf.mxu0
        %1165 = vmatprep.mubr.bf16.mxu0 0
        %1166 = vmatmul.mubr.bf16.gmra.mxu0 %v1031
        %v1167 = vpop.f32.mrf.mxu0
        %v1168 = vadd.f32 %v970, %v1167
        %v1169 = vpop.f32.mrf.mxu0
        %v1170 = vpop.f32.mrf.mxu0
        %v1171 = vadd.f32 %v970, %v1170
        %v1172 = vpop.f32.mrf.mxu0
        %1173 = vmatprep.mubr.bf16.mxu0 0
        %1174 = vmatmul.mubr.bf16.gmra.mxu0 %v1034
        %v1175 = vpop.f32.mrf.mxu0
        %v1176 = vadd.f32 %v970, %v1175
        %v1177 = vpop.f32.mrf.mxu0
        %v1178 = vpop.f32.mrf.mxu0
        %v1179 = vadd.f32 %v970, %v1178
        %v1180 = vpop.f32.mrf.mxu0
        %1181 = vmatprep.mubr.bf16.mxu0 0
        %1182 = vmatmul.mubr.bf16.gmra.mxu0 %v1037
        %v1183 = vpop.f32.mrf.mxu0
        %v1184 = vadd.f32 %v970, %v1183
        %v1185 = vpop.f32.mrf.mxu0
        %v1186 = vpop.f32.mrf.mxu0
        %v1187 = vadd.f32 %v970, %v1186
        %v1188 = vpop.f32.mrf.mxu0
        %1189 = vmatprep.mubr.bf16.mxu0 0
        %1190 = vmatmul.mubr.bf16.gmra.mxu0 %v1040
        %v1191 = vpop.f32.mrf.mxu0
        %v1192 = vadd.f32 %v970, %v1191
        %v1193 = vpop.f32.mrf.mxu0
        %v1194 = vpop.f32.mrf.mxu0
        %v1195 = vadd.f32 %v970, %v1194
        %v1196 = vpop.f32.mrf.mxu0
        %1197 = vmatprep.mubr.bf16.mxu0 0
        %1198 = vmatmul.mubr.bf16.gmra.mxu0 %v1043
        %v1199 = vpop.f32.mrf.mxu0
        %v1200 = vadd.f32 %v970, %v1199
        %v1201 = vpop.f32.mrf.mxu0
        %v1202 = vpop.f32.mrf.mxu0
        %v1203 = vadd.f32 %v970, %v1202
        %v1204 = vpop.f32.mrf.mxu0
        %1205 = vdwg.mxu0
        %v1206 = vmax.f32 %v1080, 0.0
        %v1207 = vmax.f32 %v1083, 0.0
        %v1208 = vmax.f32 %v1088, 0.0
        %v1209 = vmax.f32 %v1091, 0.0
        %v1210 = vmax.f32 %v1096, 0.0
        %v1211 = vmax.f32 %v1099, 0.0
        %v1212 = vmax.f32 %v1104, 0.0
        %v1213 = vmax.f32 %v1107, 0.0
        %v1214 = vmax.f32 %v1112, 0.0
        %v1215 = vmax.f32 %v1115, 0.0
        %v1216 = vmax.f32 %v1120, 0.0
        %v1217 = vmax.f32 %v1123, 0.0
        %v1218 = vmax.f32 %v1128, 0.0
        %v1219 = vmax.f32 %v1131, 0.0
        %v1220 = vmax.f32 %v1136, 0.0
        %v1221 = vmax.f32 %v1139, 0.0
        %v1222 = vmax.f32 %v1144, 0.0
        %v1223 = vmax.f32 %v1147, 0.0
        %v1224 = vmax.f32 %v1152, 0.0
        %v1225 = vmax.f32 %v1155, 0.0
        %v1226 = vmax.f32 %v1160, 0.0
        %v1227 = vmax.f32 %v1163, 0.0
        %v1228 = vmax.f32 %v1168, 0.0
        %v1229 = vmax.f32 %v1171, 0.0
        %v1230 = vmax.f32 %v1176, 0.0
        %v1231 = vmax.f32 %v1179, 0.0
        %v1232 = vmax.f32 %v1184, 0.0
        %v1233 = vmax.f32 %v1187, 0.0
        %v1234 = vmax.f32 %v1192, 0.0
        %v1235 = vmax.f32 %v1195, 0.0
        %v1236 = vmax.f32 %v1200, 0.0
        %v1237 = vmax.f32 %v1203, 0.0
        %v1238 = vpack.c.bf16 %v1207, %v1206
        %v1239 = vpack.c.bf16 %v1209, %v1208
        %v1240 = vpack.c.bf16 %v1211, %v1210
        %v1241 = vpack.c.bf16 %v1213, %v1212
        %v1242 = vpack.c.bf16 %v1215, %v1214
        %v1243 = vpack.c.bf16 %v1217, %v1216
        %v1244 = vpack.c.bf16 %v1219, %v1218
        %v1245 = vpack.c.bf16 %v1221, %v1220
        %v1246 = vpack.c.bf16 %v1223, %v1222
        %v1247 = vpack.c.bf16 %v1225, %v1224
        %v1248 = vpack.c.bf16 %v1227, %v1226
        %v1249 = vpack.c.bf16 %v1229, %v1228
        %v1250 = vpack.c.bf16 %v1231, %v1230
        %v1251 = vpack.c.bf16 %v1233, %v1232
        %v1252 = vpack.c.bf16 %v1235, %v1234
        %v1253 = vpack.c.bf16 %v1237, %v1236
        %v1254 = vld [vmem:[%s7] sm:$0x1]
        %v1255 = vld [vmem:[#allocation2] sm:$0x1]
        %1257 = vset.pattern.permute.xlu0 0
        %1258 = vperm.xlu0 %1257, %v1255
        %v1259 = vpop.permute.xlu0 %1258
        %v1261 = vlaneseq
        %v1262 = vshrl.u32 %v1261, 7
        %v1263 = vsub.s32 0, %v1262
        %v1264 = vrot.slane %v1259, %v1263
        %vm1265 = vcmask 261120
        %v1267 = vsel %vm1265, %v1254, 0
        %v1270 = vsel %vm1265, %v1238, 0
        %v1273 = vsel %vm1265, %v1239, 0
        %v1276 = vsel %vm1265, %v1240, 0
        %v1279 = vsel %vm1265, %v1241, 0
        %v1282 = vsel %vm1265, %v1242, 0
        %v1285 = vsel %vm1265, %v1243, 0
        %v1288 = vsel %vm1265, %v1244, 0
        %v1291 = vsel %vm1265, %v1245, 0
        %v1294 = vsel %vm1265, %v1246, 0
        %v1297 = vsel %vm1265, %v1247, 0
        %v1300 = vsel %vm1265, %v1248, 0
        %v1303 = vsel %vm1265, %v1249, 0
        %v1306 = vsel %vm1265, %v1250, 0
        %v1309 = vsel %vm1265, %v1251, 0
        %v1312 = vsel %vm1265, %v1252, 0
        %v1315 = vsel %vm1265, %v1253, 0
        %1317 = vmatprep.subr.bf16.mxu0 0
        %1318 = vmatpush1.bf16.xpose.msra.mxu0 %v1291
        %1319 = vmatprep.subr.bf16.mxu0 0
        %1320 = vmatpush1.bf16.xpose.msra.mxu0 %v1288
        %1321 = vmatprep.subr.bf16.mxu0 0
        %1322 = vmatpush1.bf16.xpose.msra.mxu0 %v1285
        %1323 = vmatprep.subr.bf16.mxu0 0
        %1324 = vmatpush1.bf16.xpose.msra.mxu0 %v1282
        %1325 = vmatprep.subr.bf16.mxu0 0
        %1326 = vmatpush1.bf16.xpose.msra.mxu0 %v1279
        %1327 = vmatprep.subr.bf16.mxu0 0
        %1328 = vmatpush1.bf16.xpose.msra.mxu0 %v1276
        %1329 = vmatprep.subr.bf16.mxu0 0
        %1330 = vmatpush1.bf16.xpose.msra.mxu0 %v1273
        %1331 = vmatprep.subr.bf16.mxu0 0
        %1332 = vmatpush1.bf16.xpose.msra.mxu0 %v1270
        %1333 = vmatprep.subr.bf16.mxu0 0
        %1334 = vmatpush2.bf16.xpose.msra.mxu0 %v1315
        %1335 = vmatprep.subr.bf16.mxu0 0
        %1336 = vmatpush2.bf16.xpose.msra.mxu0 %v1312
        %1337 = vmatprep.subr.bf16.mxu0 0
        %1338 = vmatpush2.bf16.xpose.msra.mxu0 %v1309
        %1339 = vmatprep.subr.bf16.mxu0 0
        %1340 = vmatpush2.bf16.xpose.msra.mxu0 %v1306
        %1341 = vmatprep.subr.bf16.mxu0 0
        %1342 = vmatpush2.bf16.xpose.msra.mxu0 %v1303
        %1343 = vmatprep.subr.bf16.mxu0 0
        %1344 = vmatpush2.bf16.xpose.msra.mxu0 %v1300
        %1345 = vmatprep.subr.bf16.mxu0 0
        %1346 = vmatpush2.bf16.xpose.msra.mxu0 %v1297
        %1347 = vmatprep.subr.bf16.mxu0 0
        %1348 = vmatpush2.bf16.xpose.msra.mxu0 %v1294
        %1349 = vmatprep.mubr.bf16.mxu0 0
        %1350 = vmatmul.mubr.bf16.gmra.mxu0 %v1267
        %v1351 = vpop.f32.mrf.mxu0
        %v1352 = vadd.f32 %v1264, %v1351
        %v1353 = vpop.f32.mrf.mxu0
        %v1354 = vadd.f32 %v1264, %v1353
        %v1355 = vpop.f32.mrf.mxu0
        %v1356 = vpop.f32.mrf.mxu0
        %1357 = vdwg.mxu0
        %v1360 = vcombine.low %v1352, %v1354
        %v1362 = vunpack.c.l.s4 1966171168
        %v1363 = vunpack.c.0.s8 %v1362
        %v1364 = vlaneseq
        %v1365 = vshrl.u32 %v1364, 7
        %v1366 = vsub.s32 %v1363, %v1365
        %v1367 = vrot.slane %v1360, %v1366
        %v1369 = vunpack.c.l.s4 1966171168
        %v1370 = vunpack.c.0.s8 %v1369
        %v1371 = vlaneseq
        %v1372 = vshrl.u32 %v1371, 7
        %v1373 = vsub.s32 %v1370, %v1372
        %v1374 = vrot.slane %v1367, %v1373
        %v1376 = vlaneseq
        %vm1377 = vcmp.ge.s32.totalorder %v1376, 0
        %vm1378 = vcmp.lt.s32.totalorder %v1376, 256
        %vm1379 = vmand %vm1377, %vm1378
        %1380 = vst.msk [vmem:[%s340] sm:$0x3] %vm1379, %v1374
        %s1381 = sand.u32 %s227, 1
        %s1382 = scalar_lea.sflag [#allocation4], %s1381
        %s1383 = sand.u32 %s227, 1
        %s1384 = smul.addr %s1383, 2
        %s1385 = scalar_lea.vmem [#allocation3], %s1384
        // Predicated region
        $region57: #{tpu_custom_call.1} parent=55 // pred_check
          %p1386 = pneg %p237
        $region58: #{tpu_custom_call.1} parent=55 // pred_check_branch
          %1388 = sbr.rel (%p1386) target = $region60
        $region59: #{tpu_custom_call.1} parent=55 // pred_region
          %s1390 = ssub.s32 32, 32
          %1391 = vsyncadd %s1382, %s1390
          %s1392 = smul.addr %s25, 2
          %s1393 = smul.addr %s1392, 16
          %s1394 = scalar_lea.hbm %s9, %s1393
          %s1396 = sshll.u32 %s1385, 4
          %s1397 = int_to_ptr.vmem [resolvable:$true] %s1396
          %1399 = dma.vmem_to_hbm [thread:$0]  %s1397, 32, %s1394, %s1382
        $region60: #{tpu_custom_call.1} parent=55 // pred_fallthru
          _
      $region56: #{tpu_custom_call.1} parent=5 // pred_fallthru
        _
      %p1400 = scmp.le.s32.totalorder 2, %s20
      // Predicated region
      $region61: #{tpu_custom_call.1} parent=5 // pred_check
        %p1401 = pneg %p1400
      $region62: #{tpu_custom_call.1} parent=5 // pred_check_branch
        %1403 = sbr.rel (%p1401) target = $region64
      $region63: #{tpu_custom_call.1} parent=5 // pred_region
        %s1404 = ssub.s32 %s20, 2
        // Predicated region
        $region65: #{tpu_custom_call.1} parent=63 // pred_check
          %p1405 = pneg %p243
        $region66: #{tpu_custom_call.1} parent=63 // pred_check_branch
          %1407 = sbr.rel (%p1405) target = $region68
        $region67: #{tpu_custom_call.1} parent=63 // pred_region
          %s1408 = sand.u32 %s228, 1
          %s1409 = scalar_lea.sflag [#allocation4], %s1408
          %s1410 = sand.u32 %s228, 1
          %s1411 = smul.addr %s1410, 2
          %s1412 = scalar_lea.vmem [#allocation3], %s1411
          %1413 = dma.done %s1409, 32
        $region68: #{tpu_custom_call.1} parent=63 // pred_fallthru
          _
      $region64: #{tpu_custom_call.1} parent=5 // pred_fallthru
        _
    $region6: #{tpu_custom_call.1} parent=1 // loop_footer
      %s24 = sadd.s32 1, %s20
    $region7: #{tpu_custom_call.1} parent=1 // loop_footer_branch
      %19 = sbr.rel target = $region3
    $region8: #{tpu_custom_call.1} parent=1 // loop_exit
      _
    %1414 = vsyncpa [#allocation4], 1
    %s1415 = scalar_lea.sflag [#allocation4], 1
    %1416 = vsyncpa %s1415, 1

</llo_original>
